<compile_context>
chip_gen: v7x
topology: tpu7x:2x2x1
jax: 0.10.0
libtpu: 0.0.40
codegen_flags: <defaults>
</compile_context>

<pallas_src>
import functools

import jax
import jax.numpy as jnp
from jax import lax
from jax.experimental import pallas as pl
from jax.experimental.pallas import tpu as pltpu


def lstm_special_kernel(seq2d_ref, add_ref, wih_ref, whh_ref, b_ref,
                        wlh_ref, wla_ref, bl_ref, out_ref,
                        *, seq_len, batch, hidden):
    """All refs are full-array VMEM tiles.

    seq2d_ref : (S*B, I)  time-major sequence, flattened to a sublane-dense LHS
    add_ref   : (B, A)    extra features
    wih_ref   : (I, 4H)   input->gates weight (pre-transposed)
    whh_ref   : (H, 4H)   hidden->gates weight (pre-transposed)
    b_ref     : (1, 4H)   combined bias (b_ih + b_hh)
    wlh_ref   : (H, O)    linear weight acting on lstm hidden part
    wla_ref   : (A, O)    linear weight acting on add_features part
    bl_ref    : (1, O)    linear bias
    out_ref   : (B, O)    softmax output
    """
    S, B, H = seq_len, batch, hidden

    whh = whh_ref[...]                                               # (H, 4H)

    # ---- Hoisted input projection: one lane/sublane-dense GEMM, bias folded in.
    xproj = (jnp.dot(seq2d_ref[...], wih_ref[...],
                     preferred_element_type=jnp.float32)
             + b_ref[...])                                           # (S*B, 4H)

    # ---- Hoisted add_features head (independent of the recurrence).
    y_add = (jnp.dot(add_ref[...], wla_ref[...],
                     preferred_element_type=jnp.float32)
             + bl_ref[...])                                          # (B, O)

    h = jnp.zeros((B, H), jnp.float32)
    c = jnp.zeros((B, H), jnp.float32)

    # ---- Fully unrolled time recurrence: only h @ Whh is on the serial path.
    for t in range(S):
        gates = xproj[t * B:(t + 1) * B, :] + jnp.dot(
            h, whh, preferred_element_type=jnp.float32)              # (B, 4H)
        # Whole-vreg activations (one sigmoid + one tanh over all 4H lanes),
        # then static per-gate lane slices.  PyTorch gate order: i, f, g, o.
        sig = jax.nn.sigmoid(gates)
        tnh = jnp.tanh(gates)
        i_g = sig[:, 0 * H:1 * H]
        f_g = sig[:, 1 * H:2 * H]
        g_g = tnh[:, 2 * H:3 * H]
        o_g = sig[:, 3 * H:4 * H]
        c = f_g * c + i_g * g_g
        h = o_g * jnp.tanh(c)

    # ---- Output head: concat(lstm_out, add) @ W^T + b == h @ Wh + (add @ Wa + b)
    y = jnp.dot(h, wlh_ref[...], preferred_element_type=jnp.float32) + y_add

    # softmax over dim=1 (nn.Softmax() on a 2-D input picks dim=1)
    y_max = jnp.max(y, axis=-1, keepdims=True)
    e = jnp.exp(y - y_max)
    # Exact reciprocal: keeps 1e-5 agreement with the reference (approx=True
    # would only save one VALU divide on a (2, 10) tile).
    out_ref[...] = e * pl.reciprocal(jnp.sum(e, axis=-1, keepdims=True),
                                     approx=False)


def lstm_special_forward(sequence, add_features, params):
    """sequence: (S, B, I) f32; add_features: (B, A) f32."""
    S, B, I = sequence.shape
    A = add_features.shape[1]
    w_ih, w_hh, b_ih, b_hh, w_lin, b_lin = (
        params["w_ih"], params["w_hh"], params["b_ih"], params["b_hh"],
        params["w_lin"], params["b_lin"])
    H = w_hh.shape[1]
    O = w_lin.shape[0]

    # Glue: pre-transpose / split weights so the kernel does plain GEMMs,
    # flatten the sequence to a sublane-dense (S*B, I) LHS.
    seq2d = sequence.reshape(S * B, I)
    wih_t = w_ih.T                        # (I, 4H)
    whh_t = w_hh.T                        # (H, 4H)
    b = (b_ih + b_hh).reshape(1, 4 * H)   # (1, 4H)
    wlh = w_lin[:, :H].T                  # (H, O)
    wla = w_lin[:, H:].T                  # (A, O)
    bl = b_lin.reshape(1, O)              # (1, O)

    full = lambda shape: pl.BlockSpec(shape, lambda: tuple(0 for _ in shape))
    kernel = functools.partial(lstm_special_kernel,
                               seq_len=S, batch=B, hidden=H)
    return pl.pallas_call(
        kernel,
        out_shape=jax.ShapeDtypeStruct((B, O), jnp.float32),
        grid=(),
        in_specs=[
            full((S * B, I)),
            full((B, A)),
            full((I, 4 * H)),
            full((H, 4 * H)),
            full((1, 4 * H)),
            full((H, O)),
            full((A, O)),
            full((1, O)),
        ],
        out_specs=full((B, O)),
    )(seq2d, add_features, wih_t, whh_t, b, wlh, wla, bl)


def make_params(key, input_dim, hidden_dim, add_dim, out_dim):
    ks = jax.random.split(key, 6)
    scale = 0.1
    return {
        "w_ih": scale * jax.random.normal(ks[0], (4 * hidden_dim, input_dim), jnp.float32),
        "w_hh": scale * jax.random.normal(ks[1], (4 * hidden_dim, hidden_dim), jnp.float32),
        "b_ih": scale * jax.random.normal(ks[2], (4 * hidden_dim,), jnp.float32),
        "b_hh": scale * jax.random.normal(ks[3], (4 * hidden_dim,), jnp.float32),
        "w_lin": scale * jax.random.normal(ks[4], (out_dim, hidden_dim + add_dim), jnp.float32),
        "b_lin": scale * jax.random.normal(ks[5], (out_dim,), jnp.float32),
    }


def reference_forward(sequence, add_features, params):
    """Pure-JAX reference matching PyTorch LSTM + Linear + Softmax semantics."""
    S, B, I = sequence.shape
    H = params["w_hh"].shape[1]
    h = jnp.zeros((B, H), jnp.float32)
    c = jnp.zeros((B, H), jnp.float32)
    w_ih, w_hh = params["w_ih"], params["w_hh"]
    b = params["b_ih"] + params["b_hh"]
    for t in range(S):
        g = sequence[t] @ w_ih.T + h @ w_hh.T + b
        i_g = jax.nn.sigmoid(g[:, 0 * H:1 * H])
        f_g = jax.nn.sigmoid(g[:, 1 * H:2 * H])
        g_g = jnp.tanh(g[:, 2 * H:3 * H])
        o_g = jax.nn.sigmoid(g[:, 3 * H:4 * H])
        c = f_g * c + i_g * g_g
        h = o_g * jnp.tanh(c)
    feats = jnp.concatenate([h, add_features], axis=1)
    y = feats @ params["w_lin"].T + params["b_lin"]
    return jax.nn.softmax(y, axis=1)


if __name__ == "__main__":
    seq_len, batch, input_dim, hidden_dim, add_dim, out_dim = 8, 2, 16, 32, 8, 10
    key = jax.random.PRNGKey(0)
    k_seq, k_add, k_par = jax.random.split(key, 3)
    sequence = jax.random.normal(k_seq, (seq_len, batch, input_dim), jnp.float32)
    add_features = jax.random.normal(k_add, (batch, add_dim), jnp.float32)
    params = make_params(k_par, input_dim, hidden_dim, add_dim, out_dim)

    out = lstm_special_forward(sequence, add_features, params)
    out = jax.block_until_ready(out)

    ref = reference_forward(sequence, add_features, params)
    assert out.shape == (batch, out_dim)
    assert jnp.allclose(out, ref, atol=1e-5, rtol=1e-5), (out, ref)
    print("KERNEL_OK")
</pallas_src>

<mosaic_0001>
module attributes {stable_mosaic.version = 11 : i64} {
  func.func @lstm_special_kernel(%arg0: memref<16x16xf32, #tpu.memory_space<vmem>>, %arg1: memref<2x8xf32, #tpu.memory_space<vmem>>, %arg2: memref<16x128xf32, #tpu.memory_space<vmem>>, %arg3: memref<32x128xf32, #tpu.memory_space<vmem>>, %arg4: memref<1x128xf32, #tpu.memory_space<vmem>>, %arg5: memref<32x10xf32, #tpu.memory_space<vmem>>, %arg6: memref<8x10xf32, #tpu.memory_space<vmem>>, %arg7: memref<1x10xf32, #tpu.memory_space<vmem>>, %arg8: memref<2x10xf32, #tpu.memory_space<vmem>>) attributes {dimension_semantics = [], scalar_prefetch = 0 : i64, scratch_operands = 0 : i64, tpu.core_type = #tpu.core_type<tc>} {
    %c0 = arith.constant 0 : index
    %c0_0 = arith.constant 0 : index
    %0 = vector.load %arg3[%c0, %c0_0] : memref<32x128xf32, #tpu.memory_space<vmem>>, vector<32x128xf32>
    %c0_1 = arith.constant 0 : index
    %c0_2 = arith.constant 0 : index
    %1 = vector.load %arg0[%c0_1, %c0_2] : memref<16x16xf32, #tpu.memory_space<vmem>>, vector<16x16xf32>
    %c0_3 = arith.constant 0 : index
    %c0_4 = arith.constant 0 : index
    %2 = vector.load %arg2[%c0_3, %c0_4] : memref<16x128xf32, #tpu.memory_space<vmem>>, vector<16x128xf32>
    %cst = arith.constant dense<0.000000e+00> : vector<16x128xf32>
    %3 = tpu.matmul %1, %2, %cst {dimension_numbers = #tpu.dot_dimension_numbers<[1], [0], [0], [1], [0, 0, 1, 1], [], []>} : vector<16x16xf32>, vector<16x128xf32>, vector<16x128xf32> -> vector<16x128xf32>
    %c0_5 = arith.constant 0 : index
    %c0_6 = arith.constant 0 : index
    %4 = vector.load %arg4[%c0_5, %c0_6] : memref<1x128xf32, #tpu.memory_space<vmem>>, vector<1x128xf32>
    %5 = vector.broadcast %4 : vector<1x128xf32> to vector<16x128xf32>
    %6 = arith.addf %3, %5 : vector<16x128xf32>
    %c0_7 = arith.constant 0 : index
    %c0_8 = arith.constant 0 : index
    %7 = vector.load %arg1[%c0_7, %c0_8] : memref<2x8xf32, #tpu.memory_space<vmem>>, vector<2x8xf32>
    %c0_9 = arith.constant 0 : index
    %c0_10 = arith.constant 0 : index
    %8 = vector.load %arg6[%c0_9, %c0_10] : memref<8x10xf32, #tpu.memory_space<vmem>>, vector<8x10xf32>
    %cst_11 = arith.constant dense<0.000000e+00> : vector<2x10xf32>
    %9 = tpu.matmul %7, %8, %cst_11 {dimension_numbers = #tpu.dot_dimension_numbers<[1], [0], [0], [1], [0, 0, 1, 1], [], []>} : vector<2x8xf32>, vector<8x10xf32>, vector<2x10xf32> -> vector<2x10xf32>
    %c0_12 = arith.constant 0 : index
    %c0_13 = arith.constant 0 : index
    %10 = vector.load %arg7[%c0_12, %c0_13] : memref<1x10xf32, #tpu.memory_space<vmem>>, vector<1x10xf32>
    %11 = vector.broadcast %10 : vector<1x10xf32> to vector<2x10xf32>
    %12 = arith.addf %9, %11 : vector<2x10xf32>
    %cst_14 = arith.constant 0.000000e+00 : f32
    %13 = vector.broadcast %cst_14 : f32 to vector<2x32xf32>
    %cst_15 = arith.constant 0.000000e+00 : f32
    %14 = vector.broadcast %cst_15 : f32 to vector<2x32xf32>
    %15 = vector.extract_strided_slice %6 {offsets = [0, 0], sizes = [2, 128], strides = [1, 1]} : vector<16x128xf32> to vector<2x128xf32>
    %cst_16 = arith.constant dense<0.000000e+00> : vector<2x128xf32>
    %16 = tpu.matmul %13, %0, %cst_16 {dimension_numbers = #tpu.dot_dimension_numbers<[1], [0], [0], [1], [0, 0, 1, 1], [], []>} : vector<2x32xf32>, vector<32x128xf32>, vector<2x128xf32> -> vector<2x128xf32>
    %17 = arith.addf %15, %16 : vector<2x128xf32>
    %18 = arith.negf %17 : vector<2x128xf32>
    %19 = math.exp %18 : vector<2x128xf32>
    %cst_17 = arith.constant 1.000000e+00 : f32
    %20 = vector.broadcast %cst_17 : f32 to vector<2x128xf32>
    %21 = arith.addf %20, %19 : vector<2x128xf32>
    %22 = arith.divf %20, %21 : vector<2x128xf32>
    %23 = math.tanh %17 : vector<2x128xf32>
    %24 = vector.extract_strided_slice %22 {offsets = [0, 0], sizes = [2, 32], strides = [1, 1]} : vector<2x128xf32> to vector<2x32xf32>
    %25 = vector.extract_strided_slice %22 {offsets = [0, 32], sizes = [2, 32], strides = [1, 1]} : vector<2x128xf32> to vector<2x32xf32>
    %26 = vector.extract_strided_slice %23 {offsets = [0, 64], sizes = [2, 32], strides = [1, 1]} : vector<2x128xf32> to vector<2x32xf32>
    %27 = vector.extract_strided_slice %22 {offsets = [0, 96], sizes = [2, 32], strides = [1, 1]} : vector<2x128xf32> to vector<2x32xf32>
    %28 = arith.mulf %25, %14 : vector<2x32xf32>
    %29 = arith.mulf %24, %26 : vector<2x32xf32>
    %30 = arith.addf %28, %29 : vector<2x32xf32>
    %31 = math.tanh %30 : vector<2x32xf32>
    %32 = arith.mulf %27, %31 : vector<2x32xf32>
    %33 = vector.extract_strided_slice %6 {offsets = [2, 0], sizes = [2, 128], strides = [1, 1]} : vector<16x128xf32> to vector<2x128xf32>
    %cst_18 = arith.constant dense<0.000000e+00> : vector<2x128xf32>
    %34 = tpu.matmul %32, %0, %cst_18 {dimension_numbers = #tpu.dot_dimension_numbers<[1], [0], [0], [1], [0, 0, 1, 1], [], []>} : vector<2x32xf32>, vector<32x128xf32>, vector<2x128xf32> -> vector<2x128xf32>
    %35 = arith.addf %33, %34 : vector<2x128xf32>
    %36 = arith.negf %35 : vector<2x128xf32>
    %37 = math.exp %36 : vector<2x128xf32>
    %cst_19 = arith.constant 1.000000e+00 : f32
    %38 = vector.broadcast %cst_19 : f32 to vector<2x128xf32>
    %39 = arith.addf %38, %37 : vector<2x128xf32>
    %40 = arith.divf %38, %39 : vector<2x128xf32>
    %41 = math.tanh %35 : vector<2x128xf32>
    %42 = vector.extract_strided_slice %40 {offsets = [0, 0], sizes = [2, 32], strides = [1, 1]} : vector<2x128xf32> to vector<2x32xf32>
    %43 = vector.extract_strided_slice %40 {offsets = [0, 32], sizes = [2, 32], strides = [1, 1]} : vector<2x128xf32> to vector<2x32xf32>
    %44 = vector.extract_strided_slice %41 {offsets = [0, 64], sizes = [2, 32], strides = [1, 1]} : vector<2x128xf32> to vector<2x32xf32>
    %45 = vector.extract_strided_slice %40 {offsets = [0, 96], sizes = [2, 32], strides = [1, 1]} : vector<2x128xf32> to vector<2x32xf32>
    %46 = arith.mulf %43, %30 : vector<2x32xf32>
    %47 = arith.mulf %42, %44 : vector<2x32xf32>
    %48 = arith.addf %46, %47 : vector<2x32xf32>
    %49 = math.tanh %48 : vector<2x32xf32>
    %50 = arith.mulf %45, %49 : vector<2x32xf32>
    %51 = vector.extract_strided_slice %6 {offsets = [4, 0], sizes = [2, 128], strides = [1, 1]} : vector<16x128xf32> to vector<2x128xf32>
    %cst_20 = arith.constant dense<0.000000e+00> : vector<2x128xf32>
    %52 = tpu.matmul %50, %0, %cst_20 {dimension_numbers = #tpu.dot_dimension_numbers<[1], [0], [0], [1], [0, 0, 1, 1], [], []>} : vector<2x32xf32>, vector<32x128xf32>, vector<2x128xf32> -> vector<2x128xf32>
    %53 = arith.addf %51, %52 : vector<2x128xf32>
    %54 = arith.negf %53 : vector<2x128xf32>
    %55 = math.exp %54 : vector<2x128xf32>
    %cst_21 = arith.constant 1.000000e+00 : f32
    %56 = vector.broadcast %cst_21 : f32 to vector<2x128xf32>
    %57 = arith.addf %56, %55 : vector<2x128xf32>
    %58 = arith.divf %56, %57 : vector<2x128xf32>
    %59 = math.tanh %53 : vector<2x128xf32>
    %60 = vector.extract_strided_slice %58 {offsets = [0, 0], sizes = [2, 32], strides = [1, 1]} : vector<2x128xf32> to vector<2x32xf32>
    %61 = vector.extract_strided_slice %58 {offsets = [0, 32], sizes = [2, 32], strides = [1, 1]} : vector<2x128xf32> to vector<2x32xf32>
    %62 = vector.extract_strided_slice %59 {offsets = [0, 64], sizes = [2, 32], strides = [1, 1]} : vector<2x128xf32> to vector<2x32xf32>
    %63 = vector.extract_strided_slice %58 {offsets = [0, 96], sizes = [2, 32], strides = [1, 1]} : vector<2x128xf32> to vector<2x32xf32>
    %64 = arith.mulf %61, %48 : vector<2x32xf32>
    %65 = arith.mulf %60, %62 : vector<2x32xf32>
    %66 = arith.addf %64, %65 : vector<2x32xf32>
    %67 = math.tanh %66 : vector<2x32xf32>
    %68 = arith.mulf %63, %67 : vector<2x32xf32>
    %69 = vector.extract_strided_slice %6 {offsets = [6, 0], sizes = [2, 128], strides = [1, 1]} : vector<16x128xf32> to vector<2x128xf32>
    %cst_22 = arith.constant dense<0.000000e+00> : vector<2x128xf32>
    %70 = tpu.matmul %68, %0, %cst_22 {dimension_numbers = #tpu.dot_dimension_numbers<[1], [0], [0], [1], [0, 0, 1, 1], [], []>} : vector<2x32xf32>, vector<32x128xf32>, vector<2x128xf32> -> vector<2x128xf32>
    %71 = arith.addf %69, %70 : vector<2x128xf32>
    %72 = arith.negf %71 : vector<2x128xf32>
    %73 = math.exp %72 : vector<2x128xf32>
    %cst_23 = arith.constant 1.000000e+00 : f32
    %74 = vector.broadcast %cst_23 : f32 to vector<2x128xf32>
    %75 = arith.addf %74, %73 : vector<2x128xf32>
    %76 = arith.divf %74, %75 : vector<2x128xf32>
    %77 = math.tanh %71 : vector<2x128xf32>
    %78 = vector.extract_strided_slice %76 {offsets = [0, 0], sizes = [2, 32], strides = [1, 1]} : vector<2x128xf32> to vector<2x32xf32>
    %79 = vector.extract_strided_slice %76 {offsets = [0, 32], sizes = [2, 32], strides = [1, 1]} : vector<2x128xf32> to vector<2x32xf32>
    %80 = vector.extract_strided_slice %77 {offsets = [0, 64], sizes = [2, 32], strides = [1, 1]} : vector<2x128xf32> to vector<2x32xf32>
    %81 = vector.extract_strided_slice %76 {offsets = [0, 96], sizes = [2, 32], strides = [1, 1]} : vector<2x128xf32> to vector<2x32xf32>
    %82 = arith.mulf %79, %66 : vector<2x32xf32>
    %83 = arith.mulf %78, %80 : vector<2x32xf32>
    %84 = arith.addf %82, %83 : vector<2x32xf32>
    %85 = math.tanh %84 : vector<2x32xf32>
    %86 = arith.mulf %81, %85 : vector<2x32xf32>
    %87 = vector.extract_strided_slice %6 {offsets = [8, 0], sizes = [2, 128], strides = [1, 1]} : vector<16x128xf32> to vector<2x128xf32>
    %cst_24 = arith.constant dense<0.000000e+00> : vector<2x128xf32>
    %88 = tpu.matmul %86, %0, %cst_24 {dimension_numbers = #tpu.dot_dimension_numbers<[1], [0], [0], [1], [0, 0, 1, 1], [], []>} : vector<2x32xf32>, vector<32x128xf32>, vector<2x128xf32> -> vector<2x128xf32>
    %89 = arith.addf %87, %88 : vector<2x128xf32>
    %90 = arith.negf %89 : vector<2x128xf32>
    %91 = math.exp %90 : vector<2x128xf32>
    %cst_25 = arith.constant 1.000000e+00 : f32
    %92 = vector.broadcast %cst_25 : f32 to vector<2x128xf32>
    %93 = arith.addf %92, %91 : vector<2x128xf32>
    %94 = arith.divf %92, %93 : vector<2x128xf32>
    %95 = math.tanh %89 : vector<2x128xf32>
    %96 = vector.extract_strided_slice %94 {offsets = [0, 0], sizes = [2, 32], strides = [1, 1]} : vector<2x128xf32> to vector<2x32xf32>
    %97 = vector.extract_strided_slice %94 {offsets = [0, 32], sizes = [2, 32], strides = [1, 1]} : vector<2x128xf32> to vector<2x32xf32>
    %98 = vector.extract_strided_slice %95 {offsets = [0, 64], sizes = [2, 32], strides = [1, 1]} : vector<2x128xf32> to vector<2x32xf32>
    %99 = vector.extract_strided_slice %94 {offsets = [0, 96], sizes = [2, 32], strides = [1, 1]} : vector<2x128xf32> to vector<2x32xf32>
    %100 = arith.mulf %97, %84 : vector<2x32xf32>
    %101 = arith.mulf %96, %98 : vector<2x32xf32>
    %102 = arith.addf %100, %101 : vector<2x32xf32>
    %103 = math.tanh %102 : vector<2x32xf32>
    %104 = arith.mulf %99, %103 : vector<2x32xf32>
    %105 = vector.extract_strided_slice %6 {offsets = [10, 0], sizes = [2, 128], strides = [1, 1]} : vector<16x128xf32> to vector<2x128xf32>
    %cst_26 = arith.constant dense<0.000000e+00> : vector<2x128xf32>
    %106 = tpu.matmul %104, %0, %cst_26 {dimension_numbers = #tpu.dot_dimension_numbers<[1], [0], [0], [1], [0, 0, 1, 1], [], []>} : vector<2x32xf32>, vector<32x128xf32>, vector<2x128xf32> -> vector<2x128xf32>
    %107 = arith.addf %105, %106 : vector<2x128xf32>
    %108 = arith.negf %107 : vector<2x128xf32>
    %109 = math.exp %108 : vector<2x128xf32>
    %cst_27 = arith.constant 1.000000e+00 : f32
    %110 = vector.broadcast %cst_27 : f32 to vector<2x128xf32>
    %111 = arith.addf %110, %109 : vector<2x128xf32>
    %112 = arith.divf %110, %111 : vector<2x128xf32>
    %113 = math.tanh %107 : vector<2x128xf32>
    %114 = vector.extract_strided_slice %112 {offsets = [0, 0], sizes = [2, 32], strides = [1, 1]} : vector<2x128xf32> to vector<2x32xf32>
    %115 = vector.extract_strided_slice %112 {offsets = [0, 32], sizes = [2, 32], strides = [1, 1]} : vector<2x128xf32> to vector<2x32xf32>
    %116 = vector.extract_strided_slice %113 {offsets = [0, 64], sizes = [2, 32], strides = [1, 1]} : vector<2x128xf32> to vector<2x32xf32>
    %117 = vector.extract_strided_slice %112 {offsets = [0, 96], sizes = [2, 32], strides = [1, 1]} : vector<2x128xf32> to vector<2x32xf32>
    %118 = arith.mulf %115, %102 : vector<2x32xf32>
    %119 = arith.mulf %114, %116 : vector<2x32xf32>
    %120 = arith.addf %118, %119 : vector<2x32xf32>
    %121 = math.tanh %120 : vector<2x32xf32>
    %122 = arith.mulf %117, %121 : vector<2x32xf32>
    %123 = vector.extract_strided_slice %6 {offsets = [12, 0], sizes = [2, 128], strides = [1, 1]} : vector<16x128xf32> to vector<2x128xf32>
    %cst_28 = arith.constant dense<0.000000e+00> : vector<2x128xf32>
    %124 = tpu.matmul %122, %0, %cst_28 {dimension_numbers = #tpu.dot_dimension_numbers<[1], [0], [0], [1], [0, 0, 1, 1], [], []>} : vector<2x32xf32>, vector<32x128xf32>, vector<2x128xf32> -> vector<2x128xf32>
    %125 = arith.addf %123, %124 : vector<2x128xf32>
    %126 = arith.negf %125 : vector<2x128xf32>
    %127 = math.exp %126 : vector<2x128xf32>
    %cst_29 = arith.constant 1.000000e+00 : f32
    %128 = vector.broadcast %cst_29 : f32 to vector<2x128xf32>
    %129 = arith.addf %128, %127 : vector<2x128xf32>
    %130 = arith.divf %128, %129 : vector<2x128xf32>
    %131 = math.tanh %125 : vector<2x128xf32>
    %132 = vector.extract_strided_slice %130 {offsets = [0, 0], sizes = [2, 32], strides = [1, 1]} : vector<2x128xf32> to vector<2x32xf32>
    %133 = vector.extract_strided_slice %130 {offsets = [0, 32], sizes = [2, 32], strides = [1, 1]} : vector<2x128xf32> to vector<2x32xf32>
    %134 = vector.extract_strided_slice %131 {offsets = [0, 64], sizes = [2, 32], strides = [1, 1]} : vector<2x128xf32> to vector<2x32xf32>
    %135 = vector.extract_strided_slice %130 {offsets = [0, 96], sizes = [2, 32], strides = [1, 1]} : vector<2x128xf32> to vector<2x32xf32>
    %136 = arith.mulf %133, %120 : vector<2x32xf32>
    %137 = arith.mulf %132, %134 : vector<2x32xf32>
    %138 = arith.addf %136, %137 : vector<2x32xf32>
    %139 = math.tanh %138 : vector<2x32xf32>
    %140 = arith.mulf %135, %139 : vector<2x32xf32>
    %141 = vector.extract_strided_slice %6 {offsets = [14, 0], sizes = [2, 128], strides = [1, 1]} : vector<16x128xf32> to vector<2x128xf32>
    %cst_30 = arith.constant dense<0.000000e+00> : vector<2x128xf32>
    %142 = tpu.matmul %140, %0, %cst_30 {dimension_numbers = #tpu.dot_dimension_numbers<[1], [0], [0], [1], [0, 0, 1, 1], [], []>} : vector<2x32xf32>, vector<32x128xf32>, vector<2x128xf32> -> vector<2x128xf32>
    %143 = arith.addf %141, %142 : vector<2x128xf32>
    %144 = arith.negf %143 : vector<2x128xf32>
    %145 = math.exp %144 : vector<2x128xf32>
    %cst_31 = arith.constant 1.000000e+00 : f32
    %146 = vector.broadcast %cst_31 : f32 to vector<2x128xf32>
    %147 = arith.addf %146, %145 : vector<2x128xf32>
    %148 = arith.divf %146, %147 : vector<2x128xf32>
    %149 = math.tanh %143 : vector<2x128xf32>
    %150 = vector.extract_strided_slice %148 {offsets = [0, 0], sizes = [2, 32], strides = [1, 1]} : vector<2x128xf32> to vector<2x32xf32>
    %151 = vector.extract_strided_slice %148 {offsets = [0, 32], sizes = [2, 32], strides = [1, 1]} : vector<2x128xf32> to vector<2x32xf32>
    %152 = vector.extract_strided_slice %149 {offsets = [0, 64], sizes = [2, 32], strides = [1, 1]} : vector<2x128xf32> to vector<2x32xf32>
    %153 = vector.extract_strided_slice %148 {offsets = [0, 96], sizes = [2, 32], strides = [1, 1]} : vector<2x128xf32> to vector<2x32xf32>
    %154 = arith.mulf %151, %138 : vector<2x32xf32>
    %155 = arith.mulf %150, %152 : vector<2x32xf32>
    %156 = arith.addf %154, %155 : vector<2x32xf32>
    %157 = math.tanh %156 : vector<2x32xf32>
    %158 = arith.mulf %153, %157 : vector<2x32xf32>
    %c0_32 = arith.constant 0 : index
    %c0_33 = arith.constant 0 : index
    %159 = vector.load %arg5[%c0_32, %c0_33] : memref<32x10xf32, #tpu.memory_space<vmem>>, vector<32x10xf32>
    %cst_34 = arith.constant dense<0.000000e+00> : vector<2x10xf32>
    %160 = tpu.matmul %158, %159, %cst_34 {dimension_numbers = #tpu.dot_dimension_numbers<[1], [0], [0], [1], [0, 0, 1, 1], [], []>} : vector<2x32xf32>, vector<32x10xf32>, vector<2x10xf32> -> vector<2x10xf32>
    %161 = arith.addf %160, %12 : vector<2x10xf32>
    %cst_35 = arith.constant dense<0xFF800000> : vector<2xf32>
    %162 = vector.multi_reduction <maximumf>, %161, %cst_35 [1] : vector<2x10xf32> to vector<2xf32>
    %163 = vector.shape_cast %162 : vector<2xf32> to vector<2x1xf32>
    %164 = vector.broadcast %163 : vector<2x1xf32> to vector<2x10xf32>
    %165 = arith.subf %161, %164 : vector<2x10xf32>
    %166 = math.exp %165 : vector<2x10xf32>
    %cst_36 = arith.constant dense<0.000000e+00> : vector<2xf32>
    %167 = vector.multi_reduction <add>, %166, %cst_36 [1] : vector<2x10xf32> to vector<2xf32>
    %168 = vector.shape_cast %167 : vector<2xf32> to vector<2x1xf32>
    %169 = tpu.reciprocal %168 : vector<2x1xf32> -> vector<2x1xf32>
    %170 = vector.broadcast %169 : vector<2x1xf32> to vector<2x10xf32>
    %171 = arith.mulf %166, %170 : vector<2x10xf32>
    %c0_37 = arith.constant 0 : index
    %c0_38 = arith.constant 0 : index
    %172 = vector.load %arg8[%c0_37, %c0_38] : memref<2x10xf32, #tpu.memory_space<vmem>>, vector<2x10xf32>
    tpu.vector_store %arg8[%c0_37, %c0_38], %171 {strides = array<i32>} : memref<2x10xf32, #tpu.memory_space<vmem>>, vector<2x10xf32>,
    return
  }
}

</mosaic_0001>

<llo_original>
// kernel: tpu_custom_call.1
$region0: #{tpu_custom_call.1}
  #allocation0 [shape = 'u32[]', space=smem, size = 0x4, offset = 0x4, fixed_abs, tag = 'smem constant byte address 0x4 - core index']
  #allocation1 [shape = 'u32[144,128]{1,0:T(1,128)}', space=vmem, size = 0x12000, scoped, tag = 'internal scratch']
  %s0 = inlined_call_operand.vmem [shape: f32[16,16], index: 0, kind: input, shape index: {}]
  %s1 = inlined_call_operand.vmem [shape: f32[2,8], index: 1, kind: input, shape index: {}]
  %s2 = inlined_call_operand.hbm [shape: f32[16,128], index: 2, kind: input, shape index: {}]
  %s3 = inlined_call_operand.vmem [shape: f32[32,128], index: 3, kind: input, shape index: {}]
  %s4 = inlined_call_operand.hbm [shape: f32[1,128], index: 4, kind: input, shape index: {}]
  %s5 = inlined_call_operand.vmem [shape: f32[32,10], index: 5, kind: input, shape index: {}]
  %s6 = inlined_call_operand.hbm [shape: f32[8,10], index: 6, kind: input, shape index: {}]
  %s7 = inlined_call_operand.vmem [shape: f32[1,10], index: 7, kind: input, shape index: {}]
  %s8 = inlined_call_operand.hbm [shape: f32[2,10], index: 8, kind: output, shape index: {}]
  %s9 = sld [smem:[#allocation0]]
  $region54: #{tpu_custom_call.1} parent=0
    _
  %s11 = ssub.s32 1, %s9
  %s12 = scalar_select 0, %s11, %s9
  $region1: #{tpu_custom_call.1} parent=0
    #allocation2 [shape = 'u8[8192]{0}', space=vmem, size = 0x2000, scoped, tag = 'input window, operand 2, single buffered']
    #allocation3 [shape = 's32[1]{0}', space=sflag, size = 0x4, scoped, tag = 'scoped memory for tpu_custom_call.1']
    #allocation4 [shape = 's32[1]{0}', space=sflag, size = 0x4, scoped, tag = 'scoped memory for tpu_custom_call.1']
    #allocation5 [shape = 'u8[512]{0}', space=vmem, size = 0x400, scoped, tag = 'input window, operand 4, single buffered']
    #allocation6 [shape = 's32[1]{0}', space=sflag, size = 0x4, scoped, tag = 'scoped memory for tpu_custom_call.1']
    #allocation7 [shape = 'u8[4096]{0}', space=vmem, size = 0x1000, scoped, tag = 'input window, operand 6, single buffered']
    #allocation8 [shape = 'u8[1024]{0}', space=vmem, size = 0x400, scoped, tag = 'output window, operand 0, single buffered']
    %13 = vsyncpa [#allocation3], 0
    %14 = vsyncpa [#allocation6], 0
    %15 = vsyncpa [#allocation4], 0
    // Predicated region
    $region2: #{tpu_custom_call.1} parent=1 // pred_check
      _
    $region3: #{tpu_custom_call.1} parent=1 // pred_check_branch
      %17 = sbr.rel (0) target = $region5
    $region4: #{tpu_custom_call.1} parent=1 // pred_region
      _
    $region5: #{tpu_custom_call.1} parent=1 // pred_fallthru
      _
    // Predicated region
    $region6: #{tpu_custom_call.1} parent=1 // pred_check
      _
    $region7: #{tpu_custom_call.1} parent=1 // pred_check_branch
      %19 = sbr.rel (0) target = $region9
    $region8: #{tpu_custom_call.1} parent=1 // pred_region
      _
    $region9: #{tpu_custom_call.1} parent=1 // pred_fallthru
      _
    // Predicated region
    $region10: #{tpu_custom_call.1} parent=1 // pred_check
      _
    $region11: #{tpu_custom_call.1} parent=1 // pred_check_branch
      %21 = sbr.rel (0) target = $region13
    $region12: #{tpu_custom_call.1} parent=1 // pred_region
      %s23 = ssub.s32 256, 256
      %24 = vsyncadd [#allocation3], %s23
      %s25 = sshll.u32 [#allocation2], 4
      %s26 = int_to_ptr.vmem [resolvable:$true] %s25
      %31 = dma.hbm_to_vmem [thread:$0]  %s2, 256, %s26, [#allocation3], 128, 128, 8
    $region13: #{tpu_custom_call.1} parent=1 // pred_fallthru
      _
    // Predicated region
    $region14: #{tpu_custom_call.1} parent=1 // pred_check
      _
    $region15: #{tpu_custom_call.1} parent=1 // pred_check_branch
      %33 = sbr.rel (0) target = $region17
    $region16: #{tpu_custom_call.1} parent=1 // pred_region
      _
    $region17: #{tpu_custom_call.1} parent=1 // pred_fallthru
      _
    // Predicated region
    $region18: #{tpu_custom_call.1} parent=1 // pred_check
      _
    $region19: #{tpu_custom_call.1} parent=1 // pred_check_branch
      %35 = sbr.rel (0) target = $region21
    $region20: #{tpu_custom_call.1} parent=1 // pred_region
      %s37 = ssub.s32 16, 16
      %38 = vsyncadd [#allocation6], %s37
      %s40 = sshll.u32 [#allocation5], 4
      %s41 = int_to_ptr.vmem [resolvable:$true] %s40
      %43 = dma.hbm_to_vmem [thread:$0]  %s4, 16, %s41, [#allocation6]
    $region21: #{tpu_custom_call.1} parent=1 // pred_fallthru
      _
    // Predicated region
    $region22: #{tpu_custom_call.1} parent=1 // pred_check
      _
    $region23: #{tpu_custom_call.1} parent=1 // pred_check_branch
      %45 = sbr.rel (0) target = $region25
    $region24: #{tpu_custom_call.1} parent=1 // pred_region
      _
    $region25: #{tpu_custom_call.1} parent=1 // pred_fallthru
      _
    // Predicated region
    $region26: #{tpu_custom_call.1} parent=1 // pred_check
      _
    $region27: #{tpu_custom_call.1} parent=1 // pred_check_branch
      %47 = sbr.rel (0) target = $region29
    $region28: #{tpu_custom_call.1} parent=1 // pred_region
      %s49 = ssub.s32 128, 128
      %50 = vsyncadd [#allocation6], %s49
      %s52 = sshll.u32 [#allocation7], 4
      %s53 = int_to_ptr.vmem [resolvable:$true] %s52
      %55 = dma.hbm_to_vmem [thread:$0]  %s6, 128, %s53, [#allocation6]
    $region29: #{tpu_custom_call.1} parent=1 // pred_fallthru
      _
    // Predicated region
    $region30: #{tpu_custom_call.1} parent=1 // pred_check
      _
    $region31: #{tpu_custom_call.1} parent=1 // pred_check_branch
      %57 = sbr.rel (0) target = $region33
    $region32: #{tpu_custom_call.1} parent=1 // pred_region
      _
    $region33: #{tpu_custom_call.1} parent=1 // pred_fallthru
      _
    // Predicated region
    $region34: #{tpu_custom_call.1} parent=1 // pred_check
      _
    $region35: #{tpu_custom_call.1} parent=1 // pred_check_branch
      %59 = sbr.rel (0) target = $region37
    $region36: #{tpu_custom_call.1} parent=1 // pred_region
      %60 = dma.done [#allocation3], 256
    $region37: #{tpu_custom_call.1} parent=1 // pred_fallthru
      _
    // Predicated region
    $region38: #{tpu_custom_call.1} parent=1 // pred_check
      _
    $region39: #{tpu_custom_call.1} parent=1 // pred_check_branch
      %62 = sbr.rel (0) target = $region41
    $region40: #{tpu_custom_call.1} parent=1 // pred_region
      %63 = dma.done [#allocation6], 16
    $region41: #{tpu_custom_call.1} parent=1 // pred_fallthru
      _
    // Predicated region
    $region42: #{tpu_custom_call.1} parent=1 // pred_check
      _
    $region43: #{tpu_custom_call.1} parent=1 // pred_check_branch
      %65 = sbr.rel (0) target = $region45
    $region44: #{tpu_custom_call.1} parent=1 // pred_region
      %66 = dma.done [#allocation6], 128
    $region45: #{tpu_custom_call.1} parent=1 // pred_fallthru
      _
    %v67 = vld [vmem:[%s3] sm:$0xff]
    %v68 = vld [vmem:[%s3 + $0x8] sm:$0xff]
    %v69 = vld [vmem:[%s3 + $0x10] sm:$0xff]
    %v70 = vld [vmem:[%s3 + $0x18] sm:$0xff]
    %v71 = vld [vmem:[%s0] sm:$0xff]
    %v72 = vld [vmem:[%s0 + $0x8] sm:$0xff]
    %v73 = vld [vmem:[#allocation2] sm:$0xff]
    %v74 = vld [vmem:[#allocation2 + $0x8] sm:$0xff]
    %v75 = vld [vmem:[#allocation5] sm:$0x1]
    %v77 = vlaneseq
    %v78 = vshrl.u32 %v77, 7
    %v79 = vsub.s32 0, %v78
    %v80 = vrot.slane %v75, %v79
    %vm82 = vcmask 130048
    %v84 = vsel %vm82, %v71, 0
    %v87 = vsel %vm82, %v72, 0
    %89 = vmatprep.subr.mxu0 0.0
    %90 = vmatpush1.msra.mxu0 %v73
    %91 = vmatprep.subr.mxu0 0.0
    %92 = vmatpush1.msra.mxu0 %v74
    %93 = vmatprep.subr.mxu0 0.0
    %94 = vmatpush1.msra.mxu0 0.0
    %95 = vmatprep.subr.mxu0 0.0
    %96 = vmatpush1.msra.mxu0 0.0
    %97 = vmatprep.subr.mxu0 0.0
    %98 = vmatpush1.msra.mxu0 0.0
    %99 = vmatprep.subr.mxu0 0.0
    %100 = vmatpush1.msra.mxu0 0.0
    %101 = vmatprep.subr.mxu0 0.0
    %102 = vmatpush1.msra.mxu0 0.0
    %103 = vmatprep.subr.mxu0 0.0
    %104 = vmatpush1.msra.mxu0 0.0
    %105 = vmatprep.subr.mxu0 0.0
    %106 = vmatpush1.msra.mxu0 0.0
    %107 = vmatprep.subr.mxu0 0.0
    %108 = vmatpush1.msra.mxu0 0.0
    %109 = vmatprep.subr.mxu0 0.0
    %110 = vmatpush1.msra.mxu0 0.0
    %111 = vmatprep.subr.mxu0 0.0
    %112 = vmatpush1.msra.mxu0 0.0
    %113 = vmatprep.subr.mxu0 0.0
    %114 = vmatpush1.msra.mxu0 0.0
    %115 = vmatprep.subr.mxu0 0.0
    %116 = vmatpush1.msra.mxu0 0.0
    %117 = vmatprep.subr.mxu0 0.0
    %118 = vmatpush1.msra.mxu0 0.0
    %119 = vmatprep.subr.mxu0 0.0
    %120 = vmatpush1.msra.mxu0 0.0
    %121 = vmatprep.subr.mxu0 0.0
    %122 = vmatpush1.msra.mxu0 0.0
    %123 = vmatprep.subr.mxu0 0.0
    %124 = vmatpush1.msra.mxu0 0.0
    %125 = vmatprep.subr.mxu0 0.0
    %126 = vmatpush1.msra.mxu0 0.0
    %127 = vmatprep.subr.mxu0 0.0
    %128 = vmatpush1.msra.mxu0 0.0
    %129 = vmatprep.subr.mxu0 0.0
    %130 = vmatpush1.msra.mxu0 0.0
    %131 = vmatprep.subr.mxu0 0.0
    %132 = vmatpush1.msra.mxu0 0.0
    %133 = vmatprep.subr.mxu0 0.0
    %134 = vmatpush1.msra.mxu0 0.0
    %135 = vmatprep.subr.mxu0 0.0
    %136 = vmatpush1.msra.mxu0 0.0
    %137 = vmatprep.subr.mxu0 0.0
    %138 = vmatpush1.msra.mxu0 0.0
    %139 = vmatprep.subr.mxu0 0.0
    %140 = vmatpush1.msra.mxu0 0.0
    %141 = vmatprep.subr.mxu0 0.0
    %142 = vmatpush1.msra.mxu0 0.0
    %143 = vmatprep.subr.mxu0 0.0
    %144 = vmatpush1.msra.mxu0 0.0
    %145 = vmatprep.subr.mxu0 0.0
    %146 = vmatpush1.msra.mxu0 0.0
    %147 = vmatprep.subr.mxu0 0.0
    %148 = vmatpush1.msra.mxu0 0.0
    %149 = vmatprep.subr.mxu0 0.0
    %150 = vmatpush1.msra.mxu0 0.0
    %151 = vmatprep.subr.mxu0 0.0
    %152 = vmatpush1.msra.mxu0 0.0
    %153 = vmatprep.mubr.f32.mxu0 0.0
    %154 = vmatmul.mubr.f32.gmra.mrb[0].mxu0 %v84
    %v155 = vpop.f32.mrb[0].mxu0
    %v156 = vadd.f32 %v80, %v155
    %v157 = vpop.f32.mrb[0].mxu0
    %158 = vmatprep.mubr.f32.mxu0 0.0
    %159 = vmatmul.mubr.f32.gmra.mrb[0].mxu0 %v87
    %v160 = vpop.f32.mrb[0].mxu0
    %v161 = vadd.f32 %v80, %v160
    %v162 = vpop.f32.mrb[0].mxu0
    %163 = vdwg.mxu0
    %v164 = vld [vmem:[%s1] sm:$0x3]
    %v165 = vld [vmem:[#allocation7] sm:$0xff]
    %v166 = vld [vmem:[%s7] sm:$0x1]
    %v168 = vlaneseq
    %v169 = vshrl.u32 %v168, 7
    %v170 = vsub.s32 0, %v169
    %v171 = vrot.slane %v166, %v170
    %vm173 = vcmask 64512
    %v175 = vsel %vm173, %v164, 0
    %177 = vmatprep.subr.mxu0 0.0
    %178 = vmatpush1.msra.mxu0 %v165
    %179 = vmatprep.subr.mxu0 0.0
    %180 = vmatpush1.msra.mxu0 0.0
    %181 = vmatprep.subr.mxu0 0.0
    %182 = vmatpush1.msra.mxu0 0.0
    %183 = vmatprep.subr.mxu0 0.0
    %184 = vmatpush1.msra.mxu0 0.0
    %185 = vmatprep.subr.mxu0 0.0
    %186 = vmatpush1.msra.mxu0 0.0
    %187 = vmatprep.subr.mxu0 0.0
    %188 = vmatpush1.msra.mxu0 0.0
    %189 = vmatprep.subr.mxu0 0.0
    %190 = vmatpush1.msra.mxu0 0.0
    %191 = vmatprep.subr.mxu0 0.0
    %192 = vmatpush1.msra.mxu0 0.0
    %193 = vmatprep.subr.mxu0 0.0
    %194 = vmatpush1.msra.mxu0 0.0
    %195 = vmatprep.subr.mxu0 0.0
    %196 = vmatpush1.msra.mxu0 0.0
    %197 = vmatprep.subr.mxu0 0.0
    %198 = vmatpush1.msra.mxu0 0.0
    %199 = vmatprep.subr.mxu0 0.0
    %200 = vmatpush1.msra.mxu0 0.0
    %201 = vmatprep.subr.mxu0 0.0
    %202 = vmatpush1.msra.mxu0 0.0
    %203 = vmatprep.subr.mxu0 0.0
    %204 = vmatpush1.msra.mxu0 0.0
    %205 = vmatprep.subr.mxu0 0.0
    %206 = vmatpush1.msra.mxu0 0.0
    %207 = vmatprep.subr.mxu0 0.0
    %208 = vmatpush1.msra.mxu0 0.0
    %209 = vmatprep.subr.mxu0 0.0
    %210 = vmatpush1.msra.mxu0 0.0
    %211 = vmatprep.subr.mxu0 0.0
    %212 = vmatpush1.msra.mxu0 0.0
    %213 = vmatprep.subr.mxu0 0.0
    %214 = vmatpush1.msra.mxu0 0.0
    %215 = vmatprep.subr.mxu0 0.0
    %216 = vmatpush1.msra.mxu0 0.0
    %217 = vmatprep.subr.mxu0 0.0
    %218 = vmatpush1.msra.mxu0 0.0
    %219 = vmatprep.subr.mxu0 0.0
    %220 = vmatpush1.msra.mxu0 0.0
    %221 = vmatprep.subr.mxu0 0.0
    %222 = vmatpush1.msra.mxu0 0.0
    %223 = vmatprep.subr.mxu0 0.0
    %224 = vmatpush1.msra.mxu0 0.0
    %225 = vmatprep.subr.mxu0 0.0
    %226 = vmatpush1.msra.mxu0 0.0
    %227 = vmatprep.subr.mxu0 0.0
    %228 = vmatpush1.msra.mxu0 0.0
    %229 = vmatprep.subr.mxu0 0.0
    %230 = vmatpush1.msra.mxu0 0.0
    %231 = vmatprep.subr.mxu0 0.0
    %232 = vmatpush1.msra.mxu0 0.0
    %233 = vmatprep.subr.mxu0 0.0
    %234 = vmatpush1.msra.mxu0 0.0
    %235 = vmatprep.subr.mxu0 0.0
    %236 = vmatpush1.msra.mxu0 0.0
    %237 = vmatprep.subr.mxu0 0.0
    %238 = vmatpush1.msra.mxu0 0.0
    %239 = vmatprep.subr.mxu0 0.0
    %240 = vmatpush1.msra.mxu0 0.0
    %241 = vmatprep.mubr.f32.mxu0 0.0
    %242 = vmatmul.mubr.f32.gmra.mrb[0].mxu0 %v175
    %v243 = vpop.f32.mrb[0].mxu0
    %v244 = vadd.f32 %v171, %v243
    %v245 = vpop.f32.mrb[0].mxu0
    %246 = vdwg.mxu0
    %vm247 = vcmask 261120
    %v249 = vsel %vm247, 0.0, 0
    %251 = vmatprep.subr.mxu0 0.0
    %252 = vmatpush1.msra.mxu0 %v67
    %253 = vmatprep.subr.mxu0 0.0
    %254 = vmatpush1.msra.mxu0 %v68
    %255 = vmatprep.subr.mxu0 0.0
    %256 = vmatpush1.msra.mxu0 %v69
    %257 = vmatprep.subr.mxu0 0.0
    %258 = vmatpush1.msra.mxu0 %v70
    %259 = vmatprep.subr.mxu0 0.0
    %260 = vmatpush1.msra.mxu0 0.0
    %261 = vmatprep.subr.mxu0 0.0
    %262 = vmatpush1.msra.mxu0 0.0
    %263 = vmatprep.subr.mxu0 0.0
    %264 = vmatpush1.msra.mxu0 0.0
    %265 = vmatprep.subr.mxu0 0.0
    %266 = vmatpush1.msra.mxu0 0.0
    %267 = vmatprep.subr.mxu0 0.0
    %268 = vmatpush1.msra.mxu0 0.0
    %269 = vmatprep.subr.mxu0 0.0
    %270 = vmatpush1.msra.mxu0 0.0
    %271 = vmatprep.subr.mxu0 0.0
    %272 = vmatpush1.msra.mxu0 0.0
    %273 = vmatprep.subr.mxu0 0.0
    %274 = vmatpush1.msra.mxu0 0.0
    %275 = vmatprep.subr.mxu0 0.0
    %276 = vmatpush1.msra.mxu0 0.0
    %277 = vmatprep.subr.mxu0 0.0
    %278 = vmatpush1.msra.mxu0 0.0
    %279 = vmatprep.subr.mxu0 0.0
    %280 = vmatpush1.msra.mxu0 0.0
    %281 = vmatprep.subr.mxu0 0.0
    %282 = vmatpush1.msra.mxu0 0.0
    %283 = vmatprep.subr.mxu0 0.0
    %284 = vmatpush1.msra.mxu0 0.0
    %285 = vmatprep.subr.mxu0 0.0
    %286 = vmatpush1.msra.mxu0 0.0
    %287 = vmatprep.subr.mxu0 0.0
    %288 = vmatpush1.msra.mxu0 0.0
    %289 = vmatprep.subr.mxu0 0.0
    %290 = vmatpush1.msra.mxu0 0.0
    %291 = vmatprep.subr.mxu0 0.0
    %292 = vmatpush1.msra.mxu0 0.0
    %293 = vmatprep.subr.mxu0 0.0
    %294 = vmatpush1.msra.mxu0 0.0
    %295 = vmatprep.subr.mxu0 0.0
    %296 = vmatpush1.msra.mxu0 0.0
    %297 = vmatprep.subr.mxu0 0.0
    %298 = vmatpush1.msra.mxu0 0.0
    %299 = vmatprep.subr.mxu0 0.0
    %300 = vmatpush1.msra.mxu0 0.0
    %301 = vmatprep.subr.mxu0 0.0
    %302 = vmatpush1.msra.mxu0 0.0
    %303 = vmatprep.subr.mxu0 0.0
    %304 = vmatpush1.msra.mxu0 0.0
    %305 = vmatprep.subr.mxu0 0.0
    %306 = vmatpush1.msra.mxu0 0.0
    %307 = vmatprep.subr.mxu0 0.0
    %308 = vmatpush1.msra.mxu0 0.0
    %309 = vmatprep.subr.mxu0 0.0
    %310 = vmatpush1.msra.mxu0 0.0
    %311 = vmatprep.subr.mxu0 0.0
    %312 = vmatpush1.msra.mxu0 0.0
    %313 = vmatprep.subr.mxu0 0.0
    %314 = vmatpush1.msra.mxu0 0.0
    %315 = vmatprep.mubr.f32.mxu0 0.0
    %316 = vmatmul.mubr.f32.gmra.mrb[0].mxu0 %v249
    %v317 = vpop.f32.mrb[0].mxu0
    %v318 = vadd.f32 0.0, %v317
    %v319 = vpop.f32.mrb[0].mxu0
    %320 = vdwg.mxu0
    %v321 = vadd.f32 %v156, %v318
    %v322 = vxor.u32 %v321, 2147483648
    %v323 = vmul.f32 %v322, 1.442695
    %v324 = vpow.pop %v323
    %v325 = vadd.f32 %v324, 1.0
    %v326 = vrcp.pop %v325
    %v327 = vmul.f32 1.0, %v326
    %v328 = vtanh.pop %v321
    %v329 = vmul.f32 %v327, 0.0
    %331 = vrot.lane.b32.xlu0 %v328, 64
    %v332 = vpop.permute.xlu0 %331
    %v334 = vmul.f32 %v327, %v332
    %336 = vrot.lane.b32.xlu0 %v334, 32
    %v337 = vpop.permute.xlu0 %336
    %v339 = vadd.f32 %v329, %v337
    %v340 = vtanh.pop %v339
    %342 = vrot.lane.b32.xlu0 %v340, 64
    %v343 = vpop.permute.xlu0 %342
    %v345 = vmul.f32 %v327, %v343
    %347 = vrot.lane.b32.xlu0 %v345, 32
    %v348 = vpop.permute.xlu0 %347
    %v349 = vsel %vm247, %v348, 0
    %351 = vmatprep.subr.mxu0 0.0
    %352 = vmatpush1.msra.mxu0 %v67
    %353 = vmatprep.subr.mxu0 0.0
    %354 = vmatpush1.msra.mxu0 %v68
    %355 = vmatprep.subr.mxu0 0.0
    %356 = vmatpush1.msra.mxu0 %v69
    %357 = vmatprep.subr.mxu0 0.0
    %358 = vmatpush1.msra.mxu0 %v70
    %359 = vmatprep.subr.mxu0 0.0
    %360 = vmatpush1.msra.mxu0 0.0
    %361 = vmatprep.subr.mxu0 0.0
    %362 = vmatpush1.msra.mxu0 0.0
    %363 = vmatprep.subr.mxu0 0.0
    %364 = vmatpush1.msra.mxu0 0.0
    %365 = vmatprep.subr.mxu0 0.0
    %366 = vmatpush1.msra.mxu0 0.0
    %367 = vmatprep.subr.mxu0 0.0
    %368 = vmatpush1.msra.mxu0 0.0
    %369 = vmatprep.subr.mxu0 0.0
    %370 = vmatpush1.msra.mxu0 0.0
    %371 = vmatprep.subr.mxu0 0.0
    %372 = vmatpush1.msra.mxu0 0.0
    %373 = vmatprep.subr.mxu0 0.0
    %374 = vmatpush1.msra.mxu0 0.0
    %375 = vmatprep.subr.mxu0 0.0
    %376 = vmatpush1.msra.mxu0 0.0
    %377 = vmatprep.subr.mxu0 0.0
    %378 = vmatpush1.msra.mxu0 0.0
    %379 = vmatprep.subr.mxu0 0.0
    %380 = vmatpush1.msra.mxu0 0.0
    %381 = vmatprep.subr.mxu0 0.0
    %382 = vmatpush1.msra.mxu0 0.0
    %383 = vmatprep.subr.mxu0 0.0
    %384 = vmatpush1.msra.mxu0 0.0
    %385 = vmatprep.subr.mxu0 0.0
    %386 = vmatpush1.msra.mxu0 0.0
    %387 = vmatprep.subr.mxu0 0.0
    %388 = vmatpush1.msra.mxu0 0.0
    %389 = vmatprep.subr.mxu0 0.0
    %390 = vmatpush1.msra.mxu0 0.0
    %391 = vmatprep.subr.mxu0 0.0
    %392 = vmatpush1.msra.mxu0 0.0
    %393 = vmatprep.subr.mxu0 0.0
    %394 = vmatpush1.msra.mxu0 0.0
    %395 = vmatprep.subr.mxu0 0.0
    %396 = vmatpush1.msra.mxu0 0.0
    %397 = vmatprep.subr.mxu0 0.0
    %398 = vmatpush1.msra.mxu0 0.0
    %399 = vmatprep.subr.mxu0 0.0
    %400 = vmatpush1.msra.mxu0 0.0
    %401 = vmatprep.subr.mxu0 0.0
    %402 = vmatpush1.msra.mxu0 0.0
    %403 = vmatprep.subr.mxu0 0.0
    %404 = vmatpush1.msra.mxu0 0.0
    %405 = vmatprep.subr.mxu0 0.0
    %406 = vmatpush1.msra.mxu0 0.0
    %407 = vmatprep.subr.mxu0 0.0
    %408 = vmatpush1.msra.mxu0 0.0
    %409 = vmatprep.subr.mxu0 0.0
    %410 = vmatpush1.msra.mxu0 0.0
    %411 = vmatprep.subr.mxu0 0.0
    %412 = vmatpush1.msra.mxu0 0.0
    %413 = vmatprep.subr.mxu0 0.0
    %414 = vmatpush1.msra.mxu0 0.0
    %415 = vmatprep.mubr.f32.mxu0 0.0
    %416 = vmatmul.mubr.f32.gmra.mrb[0].mxu0 %v349
    %v417 = vpop.f32.mrb[0].mxu0
    %v418 = vadd.f32 0.0, %v417
    %v419 = vpop.f32.mrb[0].mxu0
    %420 = vdwg.mxu0
    %v422 = vrot.slane %v418, 6
    %v424 = vadd.f32 %v156, %v422
    %v425 = vxor.u32 %v424, 2147483648
    %v426 = vmul.f32 %v425, 1.442695
    %v427 = vpow.pop %v426
    %v428 = vadd.f32 %v427, 1.0
    %v429 = vrcp.pop %v428
    %v430 = vmul.f32 1.0, %v429
    %v431 = vtanh.pop %v424
    %v433 = vrot.slane %v339, 6
    %v435 = vmul.f32 %v430, %v433
    %437 = vrot.lane.b32.xlu0 %v431, 64
    %v438 = vpop.permute.xlu0 %437
    %v440 = vmul.f32 %v430, %v438
    %442 = vrot.lane.b32.xlu0 %v440, 32
    %v443 = vpop.permute.xlu0 %442
    %v445 = vadd.f32 %v435, %v443
    %v446 = vtanh.pop %v445
    %448 = vrot.lane.b32.xlu0 %v446, 64
    %v449 = vpop.permute.xlu0 %448
    %v451 = vmul.f32 %v430, %v449
    %v453 = vrot.slane %v451, 2
    %454 = vrot.lane.b32.xlu0 %v453, 32
    %v455 = vpop.permute.xlu0 %454
    %v456 = vsel %vm247, %v455, 0
    %458 = vmatprep.subr.mxu0 0.0
    %459 = vmatpush1.msra.mxu0 %v67
    %460 = vmatprep.subr.mxu0 0.0
    %461 = vmatpush1.msra.mxu0 %v68
    %462 = vmatprep.subr.mxu0 0.0
    %463 = vmatpush1.msra.mxu0 %v69
    %464 = vmatprep.subr.mxu0 0.0
    %465 = vmatpush1.msra.mxu0 %v70
    %466 = vmatprep.subr.mxu0 0.0
    %467 = vmatpush1.msra.mxu0 0.0
    %468 = vmatprep.subr.mxu0 0.0
    %469 = vmatpush1.msra.mxu0 0.0
    %470 = vmatprep.subr.mxu0 0.0
    %471 = vmatpush1.msra.mxu0 0.0
    %472 = vmatprep.subr.mxu0 0.0
    %473 = vmatpush1.msra.mxu0 0.0
    %474 = vmatprep.subr.mxu0 0.0
    %475 = vmatpush1.msra.mxu0 0.0
    %476 = vmatprep.subr.mxu0 0.0
    %477 = vmatpush1.msra.mxu0 0.0
    %478 = vmatprep.subr.mxu0 0.0
    %479 = vmatpush1.msra.mxu0 0.0
    %480 = vmatprep.subr.mxu0 0.0
    %481 = vmatpush1.msra.mxu0 0.0
    %482 = vmatprep.subr.mxu0 0.0
    %483 = vmatpush1.msra.mxu0 0.0
    %484 = vmatprep.subr.mxu0 0.0
    %485 = vmatpush1.msra.mxu0 0.0
    %486 = vmatprep.subr.mxu0 0.0
    %487 = vmatpush1.msra.mxu0 0.0
    %488 = vmatprep.subr.mxu0 0.0
    %489 = vmatpush1.msra.mxu0 0.0
    %490 = vmatprep.subr.mxu0 0.0
    %491 = vmatpush1.msra.mxu0 0.0
    %492 = vmatprep.subr.mxu0 0.0
    %493 = vmatpush1.msra.mxu0 0.0
    %494 = vmatprep.subr.mxu0 0.0
    %495 = vmatpush1.msra.mxu0 0.0
    %496 = vmatprep.subr.mxu0 0.0
    %497 = vmatpush1.msra.mxu0 0.0
    %498 = vmatprep.subr.mxu0 0.0
    %499 = vmatpush1.msra.mxu0 0.0
    %500 = vmatprep.subr.mxu0 0.0
    %501 = vmatpush1.msra.mxu0 0.0
    %502 = vmatprep.subr.mxu0 0.0
    %503 = vmatpush1.msra.mxu0 0.0
    %504 = vmatprep.subr.mxu0 0.0
    %505 = vmatpush1.msra.mxu0 0.0
    %506 = vmatprep.subr.mxu0 0.0
    %507 = vmatpush1.msra.mxu0 0.0
    %508 = vmatprep.subr.mxu0 0.0
    %509 = vmatpush1.msra.mxu0 0.0
    %510 = vmatprep.subr.mxu0 0.0
    %511 = vmatpush1.msra.mxu0 0.0
    %512 = vmatprep.subr.mxu0 0.0
    %513 = vmatpush1.msra.mxu0 0.0
    %514 = vmatprep.subr.mxu0 0.0
    %515 = vmatpush1.msra.mxu0 0.0
    %516 = vmatprep.subr.mxu0 0.0
    %517 = vmatpush1.msra.mxu0 0.0
    %518 = vmatprep.subr.mxu0 0.0
    %519 = vmatpush1.msra.mxu0 0.0
    %520 = vmatprep.subr.mxu0 0.0
    %521 = vmatpush1.msra.mxu0 0.0
    %522 = vmatprep.mubr.f32.mxu0 0.0
    %523 = vmatmul.mubr.f32.gmra.mrb[0].mxu0 %v456
    %v524 = vpop.f32.mrb[0].mxu0
    %v525 = vadd.f32 0.0, %v524
    %v526 = vpop.f32.mrb[0].mxu0
    %527 = vdwg.mxu0
    %v529 = vrot.slane %v525, 4
    %v531 = vadd.f32 %v156, %v529
    %v532 = vxor.u32 %v531, 2147483648
    %v533 = vmul.f32 %v532, 1.442695
    %v534 = vpow.pop %v533
    %v535 = vadd.f32 %v534, 1.0
    %v536 = vrcp.pop %v535
    %v537 = vmul.f32 1.0, %v536
    %v538 = vtanh.pop %v531
    %v540 = vrot.slane %v445, 6
    %v542 = vmul.f32 %v537, %v540
    %544 = vrot.lane.b32.xlu0 %v538, 64
    %v545 = vpop.permute.xlu0 %544
    %v547 = vmul.f32 %v537, %v545
    %549 = vrot.lane.b32.xlu0 %v547, 32
    %v550 = vpop.permute.xlu0 %549
    %v552 = vadd.f32 %v542, %v550
    %v553 = vtanh.pop %v552
    %555 = vrot.lane.b32.xlu0 %v553, 64
    %v556 = vpop.permute.xlu0 %555
    %v558 = vmul.f32 %v537, %v556
    %v560 = vrot.slane %v558, 4
    %561 = vrot.lane.b32.xlu0 %v560, 32
    %v562 = vpop.permute.xlu0 %561
    %v563 = vsel %vm247, %v562, 0
    %565 = vmatprep.subr.mxu0 0.0
    %566 = vmatpush1.msra.mxu0 %v67
    %567 = vmatprep.subr.mxu0 0.0
    %568 = vmatpush1.msra.mxu0 %v68
    %569 = vmatprep.subr.mxu0 0.0
    %570 = vmatpush1.msra.mxu0 %v69
    %571 = vmatprep.subr.mxu0 0.0
    %572 = vmatpush1.msra.mxu0 %v70
    %573 = vmatprep.subr.mxu0 0.0
    %574 = vmatpush1.msra.mxu0 0.0
    %575 = vmatprep.subr.mxu0 0.0
    %576 = vmatpush1.msra.mxu0 0.0
    %577 = vmatprep.subr.mxu0 0.0
    %578 = vmatpush1.msra.mxu0 0.0
    %579 = vmatprep.subr.mxu0 0.0
    %580 = vmatpush1.msra.mxu0 0.0
    %581 = vmatprep.subr.mxu0 0.0
    %582 = vmatpush1.msra.mxu0 0.0
    %583 = vmatprep.subr.mxu0 0.0
    %584 = vmatpush1.msra.mxu0 0.0
    %585 = vmatprep.subr.mxu0 0.0
    %586 = vmatpush1.msra.mxu0 0.0
    %587 = vmatprep.subr.mxu0 0.0
    %588 = vmatpush1.msra.mxu0 0.0
    %589 = vmatprep.subr.mxu0 0.0
    %590 = vmatpush1.msra.mxu0 0.0
    %591 = vmatprep.subr.mxu0 0.0
    %592 = vmatpush1.msra.mxu0 0.0
    %593 = vmatprep.subr.mxu0 0.0
    %594 = vmatpush1.msra.mxu0 0.0
    %595 = vmatprep.subr.mxu0 0.0
    %596 = vmatpush1.msra.mxu0 0.0
    %597 = vmatprep.subr.mxu0 0.0
    %598 = vmatpush1.msra.mxu0 0.0
    %599 = vmatprep.subr.mxu0 0.0
    %600 = vmatpush1.msra.mxu0 0.0
    %601 = vmatprep.subr.mxu0 0.0
    %602 = vmatpush1.msra.mxu0 0.0
    %603 = vmatprep.subr.mxu0 0.0
    %604 = vmatpush1.msra.mxu0 0.0
    %605 = vmatprep.subr.mxu0 0.0
    %606 = vmatpush1.msra.mxu0 0.0
    %607 = vmatprep.subr.mxu0 0.0
    %608 = vmatpush1.msra.mxu0 0.0
    %609 = vmatprep.subr.mxu0 0.0
    %610 = vmatpush1.msra.mxu0 0.0
    %611 = vmatprep.subr.mxu0 0.0
    %612 = vmatpush1.msra.mxu0 0.0
    %613 = vmatprep.subr.mxu0 0.0
    %614 = vmatpush1.msra.mxu0 0.0
    %615 = vmatprep.subr.mxu0 0.0
    %616 = vmatpush1.msra.mxu0 0.0
    %617 = vmatprep.subr.mxu0 0.0
    %618 = vmatpush1.msra.mxu0 0.0
    %619 = vmatprep.subr.mxu0 0.0
    %620 = vmatpush1.msra.mxu0 0.0
    %621 = vmatprep.subr.mxu0 0.0
    %622 = vmatpush1.msra.mxu0 0.0
    %623 = vmatprep.subr.mxu0 0.0
    %624 = vmatpush1.msra.mxu0 0.0
    %625 = vmatprep.subr.mxu0 0.0
    %626 = vmatpush1.msra.mxu0 0.0
    %627 = vmatprep.subr.mxu0 0.0
    %628 = vmatpush1.msra.mxu0 0.0
    %629 = vmatprep.mubr.f32.mxu0 0.0
    %630 = vmatmul.mubr.f32.gmra.mrb[0].mxu0 %v563
    %v631 = vpop.f32.mrb[0].mxu0
    %v632 = vadd.f32 0.0, %v631
    %v633 = vpop.f32.mrb[0].mxu0
    %634 = vdwg.mxu0
    %v636 = vrot.slane %v632, 2
    %v638 = vadd.f32 %v156, %v636
    %v639 = vxor.u32 %v638, 2147483648
    %v640 = vmul.f32 %v639, 1.442695
    %v641 = vpow.pop %v640
    %v642 = vadd.f32 %v641, 1.0
    %v643 = vrcp.pop %v642
    %v644 = vmul.f32 1.0, %v643
    %v645 = vtanh.pop %v638
    %v647 = vrot.slane %v552, 6
    %v649 = vmul.f32 %v644, %v647
    %651 = vrot.lane.b32.xlu0 %v645, 64
    %v652 = vpop.permute.xlu0 %651
    %v654 = vmul.f32 %v644, %v652
    %656 = vrot.lane.b32.xlu0 %v654, 32
    %v657 = vpop.permute.xlu0 %656
    %v659 = vadd.f32 %v649, %v657
    %v660 = vtanh.pop %v659
    %662 = vrot.lane.b32.xlu0 %v660, 64
    %v663 = vpop.permute.xlu0 %662
    %v665 = vmul.f32 %v644, %v663
    %v667 = vrot.slane %v665, 6
    %668 = vrot.lane.b32.xlu0 %v667, 32
    %v669 = vpop.permute.xlu0 %668
    %v670 = vsel %vm247, %v669, 0
    %672 = vmatprep.subr.mxu0 0.0
    %673 = vmatpush1.msra.mxu0 %v67
    %674 = vmatprep.subr.mxu0 0.0
    %675 = vmatpush1.msra.mxu0 %v68
    %676 = vmatprep.subr.mxu0 0.0
    %677 = vmatpush1.msra.mxu0 %v69
    %678 = vmatprep.subr.mxu0 0.0
    %679 = vmatpush1.msra.mxu0 %v70
    %680 = vmatprep.subr.mxu0 0.0
    %681 = vmatpush1.msra.mxu0 0.0
    %682 = vmatprep.subr.mxu0 0.0
    %683 = vmatpush1.msra.mxu0 0.0
    %684 = vmatprep.subr.mxu0 0.0
    %685 = vmatpush1.msra.mxu0 0.0
    %686 = vmatprep.subr.mxu0 0.0
    %687 = vmatpush1.msra.mxu0 0.0
    %688 = vmatprep.subr.mxu0 0.0
    %689 = vmatpush1.msra.mxu0 0.0
    %690 = vmatprep.subr.mxu0 0.0
    %691 = vmatpush1.msra.mxu0 0.0
    %692 = vmatprep.subr.mxu0 0.0
    %693 = vmatpush1.msra.mxu0 0.0
    %694 = vmatprep.subr.mxu0 0.0
    %695 = vmatpush1.msra.mxu0 0.0
    %696 = vmatprep.subr.mxu0 0.0
    %697 = vmatpush1.msra.mxu0 0.0
    %698 = vmatprep.subr.mxu0 0.0
    %699 = vmatpush1.msra.mxu0 0.0
    %700 = vmatprep.subr.mxu0 0.0
    %701 = vmatpush1.msra.mxu0 0.0
    %702 = vmatprep.subr.mxu0 0.0
    %703 = vmatpush1.msra.mxu0 0.0
    %704 = vmatprep.subr.mxu0 0.0
    %705 = vmatpush1.msra.mxu0 0.0
    %706 = vmatprep.subr.mxu0 0.0
    %707 = vmatpush1.msra.mxu0 0.0
    %708 = vmatprep.subr.mxu0 0.0
    %709 = vmatpush1.msra.mxu0 0.0
    %710 = vmatprep.subr.mxu0 0.0
    %711 = vmatpush1.msra.mxu0 0.0
    %712 = vmatprep.subr.mxu0 0.0
    %713 = vmatpush1.msra.mxu0 0.0
    %714 = vmatprep.subr.mxu0 0.0
    %715 = vmatpush1.msra.mxu0 0.0
    %716 = vmatprep.subr.mxu0 0.0
    %717 = vmatpush1.msra.mxu0 0.0
    %718 = vmatprep.subr.mxu0 0.0
    %719 = vmatpush1.msra.mxu0 0.0
    %720 = vmatprep.subr.mxu0 0.0
    %721 = vmatpush1.msra.mxu0 0.0
    %722 = vmatprep.subr.mxu0 0.0
    %723 = vmatpush1.msra.mxu0 0.0
    %724 = vmatprep.subr.mxu0 0.0
    %725 = vmatpush1.msra.mxu0 0.0
    %726 = vmatprep.subr.mxu0 0.0
    %727 = vmatpush1.msra.mxu0 0.0
    %728 = vmatprep.subr.mxu0 0.0
    %729 = vmatpush1.msra.mxu0 0.0
    %730 = vmatprep.subr.mxu0 0.0
    %731 = vmatpush1.msra.mxu0 0.0
    %732 = vmatprep.subr.mxu0 0.0
    %733 = vmatpush1.msra.mxu0 0.0
    %734 = vmatprep.subr.mxu0 0.0
    %735 = vmatpush1.msra.mxu0 0.0
    %736 = vmatprep.mubr.f32.mxu0 0.0
    %737 = vmatmul.mubr.f32.gmra.mrb[0].mxu0 %v670
    %v738 = vpop.f32.mrb[0].mxu0
    %v739 = vadd.f32 0.0, %v738
    %v740 = vpop.f32.mrb[0].mxu0
    %741 = vdwg.mxu0
    %v742 = vadd.f32 %v161, %v739
    %v743 = vxor.u32 %v742, 2147483648
    %v744 = vmul.f32 %v743, 1.442695
    %v745 = vpow.pop %v744
    %v746 = vadd.f32 %v745, 1.0
    %v747 = vrcp.pop %v746
    %v748 = vmul.f32 1.0, %v747
    %v749 = vtanh.pop %v742
    %v751 = vrot.slane %v659, 6
    %v753 = vmul.f32 %v748, %v751
    %755 = vrot.lane.b32.xlu0 %v749, 64
    %v756 = vpop.permute.xlu0 %755
    %v758 = vmul.f32 %v748, %v756
    %760 = vrot.lane.b32.xlu0 %v758, 32
    %v761 = vpop.permute.xlu0 %760
    %v763 = vadd.f32 %v753, %v761
    %v764 = vtanh.pop %v763
    %766 = vrot.lane.b32.xlu0 %v764, 64
    %v767 = vpop.permute.xlu0 %766
    %v769 = vmul.f32 %v748, %v767
    %771 = vrot.lane.b32.xlu0 %v769, 32
    %v772 = vpop.permute.xlu0 %771
    %v773 = vsel %vm247, %v772, 0
    %775 = vmatprep.subr.mxu0 0.0
    %776 = vmatpush1.msra.mxu0 %v67
    %777 = vmatprep.subr.mxu0 0.0
    %778 = vmatpush1.msra.mxu0 %v68
    %779 = vmatprep.subr.mxu0 0.0
    %780 = vmatpush1.msra.mxu0 %v69
    %781 = vmatprep.subr.mxu0 0.0
    %782 = vmatpush1.msra.mxu0 %v70
    %783 = vmatprep.subr.mxu0 0.0
    %784 = vmatpush1.msra.mxu0 0.0
    %785 = vmatprep.subr.mxu0 0.0
    %786 = vmatpush1.msra.mxu0 0.0
    %787 = vmatprep.subr.mxu0 0.0
    %788 = vmatpush1.msra.mxu0 0.0
    %789 = vmatprep.subr.mxu0 0.0
    %790 = vmatpush1.msra.mxu0 0.0
    %791 = vmatprep.subr.mxu0 0.0
    %792 = vmatpush1.msra.mxu0 0.0
    %793 = vmatprep.subr.mxu0 0.0
    %794 = vmatpush1.msra.mxu0 0.0
    %795 = vmatprep.subr.mxu0 0.0
    %796 = vmatpush1.msra.mxu0 0.0
    %797 = vmatprep.subr.mxu0 0.0
    %798 = vmatpush1.msra.mxu0 0.0
    %799 = vmatprep.subr.mxu0 0.0
    %800 = vmatpush1.msra.mxu0 0.0
    %801 = vmatprep.subr.mxu0 0.0
    %802 = vmatpush1.msra.mxu0 0.0
    %803 = vmatprep.subr.mxu0 0.0
    %804 = vmatpush1.msra.mxu0 0.0
    %805 = vmatprep.subr.mxu0 0.0
    %806 = vmatpush1.msra.mxu0 0.0
    %807 = vmatprep.subr.mxu0 0.0
    %808 = vmatpush1.msra.mxu0 0.0
    %809 = vmatprep.subr.mxu0 0.0
    %810 = vmatpush1.msra.mxu0 0.0
    %811 = vmatprep.subr.mxu0 0.0
    %812 = vmatpush1.msra.mxu0 0.0
    %813 = vmatprep.subr.mxu0 0.0
    %814 = vmatpush1.msra.mxu0 0.0
    %815 = vmatprep.subr.mxu0 0.0
    %816 = vmatpush1.msra.mxu0 0.0
    %817 = vmatprep.subr.mxu0 0.0
    %818 = vmatpush1.msra.mxu0 0.0
    %819 = vmatprep.subr.mxu0 0.0
    %820 = vmatpush1.msra.mxu0 0.0
    %821 = vmatprep.subr.mxu0 0.0
    %822 = vmatpush1.msra.mxu0 0.0
    %823 = vmatprep.subr.mxu0 0.0
    %824 = vmatpush1.msra.mxu0 0.0
    %825 = vmatprep.subr.mxu0 0.0
    %826 = vmatpush1.msra.mxu0 0.0
    %827 = vmatprep.subr.mxu0 0.0
    %828 = vmatpush1.msra.mxu0 0.0
    %829 = vmatprep.subr.mxu0 0.0
    %830 = vmatpush1.msra.mxu0 0.0
    %831 = vmatprep.subr.mxu0 0.0
    %832 = vmatpush1.msra.mxu0 0.0
    %833 = vmatprep.subr.mxu0 0.0
    %834 = vmatpush1.msra.mxu0 0.0
    %835 = vmatprep.subr.mxu0 0.0
    %836 = vmatpush1.msra.mxu0 0.0
    %837 = vmatprep.subr.mxu0 0.0
    %838 = vmatpush1.msra.mxu0 0.0
    %839 = vmatprep.mubr.f32.mxu0 0.0
    %840 = vmatmul.mubr.f32.gmra.mrb[0].mxu0 %v773
    %v841 = vpop.f32.mrb[0].mxu0
    %v842 = vadd.f32 0.0, %v841
    %v843 = vpop.f32.mrb[0].mxu0
    %844 = vdwg.mxu0
    %v846 = vrot.slane %v842, 6
    %v848 = vadd.f32 %v161, %v846
    %v849 = vxor.u32 %v848, 2147483648
    %v850 = vmul.f32 %v849, 1.442695
    %v851 = vpow.pop %v850
    %v852 = vadd.f32 %v851, 1.0
    %v853 = vrcp.pop %v852
    %v854 = vmul.f32 1.0, %v853
    %v855 = vtanh.pop %v848
    %v857 = vrot.slane %v763, 6
    %v859 = vmul.f32 %v854, %v857
    %861 = vrot.lane.b32.xlu0 %v855, 64
    %v862 = vpop.permute.xlu0 %861
    %v864 = vmul.f32 %v854, %v862
    %866 = vrot.lane.b32.xlu0 %v864, 32
    %v867 = vpop.permute.xlu0 %866
    %v869 = vadd.f32 %v859, %v867
    %v870 = vtanh.pop %v869
    %872 = vrot.lane.b32.xlu0 %v870, 64
    %v873 = vpop.permute.xlu0 %872
    %v875 = vmul.f32 %v854, %v873
    %v877 = vrot.slane %v875, 2
    %878 = vrot.lane.b32.xlu0 %v877, 32
    %v879 = vpop.permute.xlu0 %878
    %v880 = vsel %vm247, %v879, 0
    %882 = vmatprep.subr.mxu0 0.0
    %883 = vmatpush1.msra.mxu0 %v67
    %884 = vmatprep.subr.mxu0 0.0
    %885 = vmatpush1.msra.mxu0 %v68
    %886 = vmatprep.subr.mxu0 0.0
    %887 = vmatpush1.msra.mxu0 %v69
    %888 = vmatprep.subr.mxu0 0.0
    %889 = vmatpush1.msra.mxu0 %v70
    %890 = vmatprep.subr.mxu0 0.0
    %891 = vmatpush1.msra.mxu0 0.0
    %892 = vmatprep.subr.mxu0 0.0
    %893 = vmatpush1.msra.mxu0 0.0
    %894 = vmatprep.subr.mxu0 0.0
    %895 = vmatpush1.msra.mxu0 0.0
    %896 = vmatprep.subr.mxu0 0.0
    %897 = vmatpush1.msra.mxu0 0.0
    %898 = vmatprep.subr.mxu0 0.0
    %899 = vmatpush1.msra.mxu0 0.0
    %900 = vmatprep.subr.mxu0 0.0
    %901 = vmatpush1.msra.mxu0 0.0
    %902 = vmatprep.subr.mxu0 0.0
    %903 = vmatpush1.msra.mxu0 0.0
    %904 = vmatprep.subr.mxu0 0.0
    %905 = vmatpush1.msra.mxu0 0.0
    %906 = vmatprep.subr.mxu0 0.0
    %907 = vmatpush1.msra.mxu0 0.0
    %908 = vmatprep.subr.mxu0 0.0
    %909 = vmatpush1.msra.mxu0 0.0
    %910 = vmatprep.subr.mxu0 0.0
    %911 = vmatpush1.msra.mxu0 0.0
    %912 = vmatprep.subr.mxu0 0.0
    %913 = vmatpush1.msra.mxu0 0.0
    %914 = vmatprep.subr.mxu0 0.0
    %915 = vmatpush1.msra.mxu0 0.0
    %916 = vmatprep.subr.mxu0 0.0
    %917 = vmatpush1.msra.mxu0 0.0
    %918 = vmatprep.subr.mxu0 0.0
    %919 = vmatpush1.msra.mxu0 0.0
    %920 = vmatprep.subr.mxu0 0.0
    %921 = vmatpush1.msra.mxu0 0.0
    %922 = vmatprep.subr.mxu0 0.0
    %923 = vmatpush1.msra.mxu0 0.0
    %924 = vmatprep.subr.mxu0 0.0
    %925 = vmatpush1.msra.mxu0 0.0
    %926 = vmatprep.subr.mxu0 0.0
    %927 = vmatpush1.msra.mxu0 0.0
    %928 = vmatprep.subr.mxu0 0.0
    %929 = vmatpush1.msra.mxu0 0.0
    %930 = vmatprep.subr.mxu0 0.0
    %931 = vmatpush1.msra.mxu0 0.0
    %932 = vmatprep.subr.mxu0 0.0
    %933 = vmatpush1.msra.mxu0 0.0
    %934 = vmatprep.subr.mxu0 0.0
    %935 = vmatpush1.msra.mxu0 0.0
    %936 = vmatprep.subr.mxu0 0.0
    %937 = vmatpush1.msra.mxu0 0.0
    %938 = vmatprep.subr.mxu0 0.0
    %939 = vmatpush1.msra.mxu0 0.0
    %940 = vmatprep.subr.mxu0 0.0
    %941 = vmatpush1.msra.mxu0 0.0
    %942 = vmatprep.subr.mxu0 0.0
    %943 = vmatpush1.msra.mxu0 0.0
    %944 = vmatprep.subr.mxu0 0.0
    %945 = vmatpush1.msra.mxu0 0.0
    %946 = vmatprep.mubr.f32.mxu0 0.0
    %947 = vmatmul.mubr.f32.gmra.mrb[0].mxu0 %v880
    %v948 = vpop.f32.mrb[0].mxu0
    %v949 = vadd.f32 0.0, %v948
    %v950 = vpop.f32.mrb[0].mxu0
    %951 = vdwg.mxu0
    %v953 = vrot.slane %v949, 4
    %v955 = vadd.f32 %v161, %v953
    %v956 = vxor.u32 %v955, 2147483648
    %v957 = vmul.f32 %v956, 1.442695
    %v958 = vpow.pop %v957
    %v959 = vadd.f32 %v958, 1.0
    %v960 = vrcp.pop %v959
    %v961 = vmul.f32 1.0, %v960
    %v962 = vtanh.pop %v955
    %v964 = vrot.slane %v869, 6
    %v966 = vmul.f32 %v961, %v964
    %968 = vrot.lane.b32.xlu0 %v962, 64
    %v969 = vpop.permute.xlu0 %968
    %v971 = vmul.f32 %v961, %v969
    %973 = vrot.lane.b32.xlu0 %v971, 32
    %v974 = vpop.permute.xlu0 %973
    %v976 = vadd.f32 %v966, %v974
    %v977 = vtanh.pop %v976
    %979 = vrot.lane.b32.xlu0 %v977, 64
    %v980 = vpop.permute.xlu0 %979
    %v982 = vmul.f32 %v961, %v980
    %v984 = vrot.slane %v982, 4
    %985 = vrot.lane.b32.xlu0 %v984, 32
    %v986 = vpop.permute.xlu0 %985
    %v987 = vsel %vm247, %v986, 0
    %989 = vmatprep.subr.mxu0 0.0
    %990 = vmatpush1.msra.mxu0 %v67
    %991 = vmatprep.subr.mxu0 0.0
    %992 = vmatpush1.msra.mxu0 %v68
    %993 = vmatprep.subr.mxu0 0.0
    %994 = vmatpush1.msra.mxu0 %v69
    %995 = vmatprep.subr.mxu0 0.0
    %996 = vmatpush1.msra.mxu0 %v70
    %997 = vmatprep.subr.mxu0 0.0
    %998 = vmatpush1.msra.mxu0 0.0
    %999 = vmatprep.subr.mxu0 0.0
    %1000 = vmatpush1.msra.mxu0 0.0
    %1001 = vmatprep.subr.mxu0 0.0
    %1002 = vmatpush1.msra.mxu0 0.0
    %1003 = vmatprep.subr.mxu0 0.0
    %1004 = vmatpush1.msra.mxu0 0.0
    %1005 = vmatprep.subr.mxu0 0.0
    %1006 = vmatpush1.msra.mxu0 0.0
    %1007 = vmatprep.subr.mxu0 0.0
    %1008 = vmatpush1.msra.mxu0 0.0
    %1009 = vmatprep.subr.mxu0 0.0
    %1010 = vmatpush1.msra.mxu0 0.0
    %1011 = vmatprep.subr.mxu0 0.0
    %1012 = vmatpush1.msra.mxu0 0.0
    %1013 = vmatprep.subr.mxu0 0.0
    %1014 = vmatpush1.msra.mxu0 0.0
    %1015 = vmatprep.subr.mxu0 0.0
    %1016 = vmatpush1.msra.mxu0 0.0
    %1017 = vmatprep.subr.mxu0 0.0
    %1018 = vmatpush1.msra.mxu0 0.0
    %1019 = vmatprep.subr.mxu0 0.0
    %1020 = vmatpush1.msra.mxu0 0.0
    %1021 = vmatprep.subr.mxu0 0.0
    %1022 = vmatpush1.msra.mxu0 0.0
    %1023 = vmatprep.subr.mxu0 0.0
    %1024 = vmatpush1.msra.mxu0 0.0
    %1025 = vmatprep.subr.mxu0 0.0
    %1026 = vmatpush1.msra.mxu0 0.0
    %1027 = vmatprep.subr.mxu0 0.0
    %1028 = vmatpush1.msra.mxu0 0.0
    %1029 = vmatprep.subr.mxu0 0.0
    %1030 = vmatpush1.msra.mxu0 0.0
    %1031 = vmatprep.subr.mxu0 0.0
    %1032 = vmatpush1.msra.mxu0 0.0
    %1033 = vmatprep.subr.mxu0 0.0
    %1034 = vmatpush1.msra.mxu0 0.0
    %1035 = vmatprep.subr.mxu0 0.0
    %1036 = vmatpush1.msra.mxu0 0.0
    %1037 = vmatprep.subr.mxu0 0.0
    %1038 = vmatpush1.msra.mxu0 0.0
    %1039 = vmatprep.subr.mxu0 0.0
    %1040 = vmatpush1.msra.mxu0 0.0
    %1041 = vmatprep.subr.mxu0 0.0
    %1042 = vmatpush1.msra.mxu0 0.0
    %1043 = vmatprep.subr.mxu0 0.0
    %1044 = vmatpush1.msra.mxu0 0.0
    %1045 = vmatprep.subr.mxu0 0.0
    %1046 = vmatpush1.msra.mxu0 0.0
    %1047 = vmatprep.subr.mxu0 0.0
    %1048 = vmatpush1.msra.mxu0 0.0
    %1049 = vmatprep.subr.mxu0 0.0
    %1050 = vmatpush1.msra.mxu0 0.0
    %1051 = vmatprep.subr.mxu0 0.0
    %1052 = vmatpush1.msra.mxu0 0.0
    %1053 = vmatprep.mubr.f32.mxu0 0.0
    %1054 = vmatmul.mubr.f32.gmra.mrb[0].mxu0 %v987
    %v1055 = vpop.f32.mrb[0].mxu0
    %v1056 = vadd.f32 0.0, %v1055
    %v1057 = vpop.f32.mrb[0].mxu0
    %1058 = vdwg.mxu0
    %v1060 = vrot.slane %v1056, 2
    %v1062 = vadd.f32 %v161, %v1060
    %v1063 = vxor.u32 %v1062, 2147483648
    %v1064 = vmul.f32 %v1063, 1.442695
    %v1065 = vpow.pop %v1064
    %v1066 = vadd.f32 %v1065, 1.0
    %v1067 = vrcp.pop %v1066
    %v1068 = vmul.f32 1.0, %v1067
    %v1069 = vtanh.pop %v1062
    %v1071 = vrot.slane %v976, 6
    %v1073 = vmul.f32 %v1068, %v1071
    %1075 = vrot.lane.b32.xlu0 %v1069, 64
    %v1076 = vpop.permute.xlu0 %1075
    %v1078 = vmul.f32 %v1068, %v1076
    %1080 = vrot.lane.b32.xlu0 %v1078, 32
    %v1081 = vpop.permute.xlu0 %1080
    %v1083 = vadd.f32 %v1073, %v1081
    %v1084 = vtanh.pop %v1083
    %1086 = vrot.lane.b32.xlu0 %v1084, 64
    %v1087 = vpop.permute.xlu0 %1086
    %v1089 = vmul.f32 %v1068, %v1087
    %v1090 = vld [vmem:[%s5] sm:$0xff]
    %v1091 = vld [vmem:[%s5 + $0x8] sm:$0xff]
    %v1092 = vld [vmem:[%s5 + $0x10] sm:$0xff]
    %v1093 = vld [vmem:[%s5 + $0x18] sm:$0xff]
    %v1095 = vrot.slane %v1089, 6
    %1096 = vrot.lane.b32.xlu0 %v1095, 32
    %v1097 = vpop.permute.xlu0 %1096
    %v1098 = vsel %vm247, %v1097, 0
    %1100 = vmatprep.subr.mxu0 0.0
    %1101 = vmatpush1.msra.mxu0 %v1090
    %1102 = vmatprep.subr.mxu0 0.0
    %1103 = vmatpush1.msra.mxu0 %v1091
    %1104 = vmatprep.subr.mxu0 0.0
    %1105 = vmatpush1.msra.mxu0 %v1092
    %1106 = vmatprep.subr.mxu0 0.0
    %1107 = vmatpush1.msra.mxu0 %v1093
    %1108 = vmatprep.subr.mxu0 0.0
    %1109 = vmatpush1.msra.mxu0 0.0
    %1110 = vmatprep.subr.mxu0 0.0
    %1111 = vmatpush1.msra.mxu0 0.0
    %1112 = vmatprep.subr.mxu0 0.0
    %1113 = vmatpush1.msra.mxu0 0.0
    %1114 = vmatprep.subr.mxu0 0.0
    %1115 = vmatpush1.msra.mxu0 0.0
    %1116 = vmatprep.subr.mxu0 0.0
    %1117 = vmatpush1.msra.mxu0 0.0
    %1118 = vmatprep.subr.mxu0 0.0
    %1119 = vmatpush1.msra.mxu0 0.0
    %1120 = vmatprep.subr.mxu0 0.0
    %1121 = vmatpush1.msra.mxu0 0.0
    %1122 = vmatprep.subr.mxu0 0.0
    %1123 = vmatpush1.msra.mxu0 0.0
    %1124 = vmatprep.subr.mxu0 0.0
    %1125 = vmatpush1.msra.mxu0 0.0
    %1126 = vmatprep.subr.mxu0 0.0
    %1127 = vmatpush1.msra.mxu0 0.0
    %1128 = vmatprep.subr.mxu0 0.0
    %1129 = vmatpush1.msra.mxu0 0.0
    %1130 = vmatprep.subr.mxu0 0.0
    %1131 = vmatpush1.msra.mxu0 0.0
    %1132 = vmatprep.subr.mxu0 0.0
    %1133 = vmatpush1.msra.mxu0 0.0
    %1134 = vmatprep.subr.mxu0 0.0
    %1135 = vmatpush1.msra.mxu0 0.0
    %1136 = vmatprep.subr.mxu0 0.0
    %1137 = vmatpush1.msra.mxu0 0.0
    %1138 = vmatprep.subr.mxu0 0.0
    %1139 = vmatpush1.msra.mxu0 0.0
    %1140 = vmatprep.subr.mxu0 0.0
    %1141 = vmatpush1.msra.mxu0 0.0
    %1142 = vmatprep.subr.mxu0 0.0
    %1143 = vmatpush1.msra.mxu0 0.0
    %1144 = vmatprep.subr.mxu0 0.0
    %1145 = vmatpush1.msra.mxu0 0.0
    %1146 = vmatprep.subr.mxu0 0.0
    %1147 = vmatpush1.msra.mxu0 0.0
    %1148 = vmatprep.subr.mxu0 0.0
    %1149 = vmatpush1.msra.mxu0 0.0
    %1150 = vmatprep.subr.mxu0 0.0
    %1151 = vmatpush1.msra.mxu0 0.0
    %1152 = vmatprep.subr.mxu0 0.0
    %1153 = vmatpush1.msra.mxu0 0.0
    %1154 = vmatprep.subr.mxu0 0.0
    %1155 = vmatpush1.msra.mxu0 0.0
    %1156 = vmatprep.subr.mxu0 0.0
    %1157 = vmatpush1.msra.mxu0 0.0
    %1158 = vmatprep.subr.mxu0 0.0
    %1159 = vmatpush1.msra.mxu0 0.0
    %1160 = vmatprep.subr.mxu0 0.0
    %1161 = vmatpush1.msra.mxu0 0.0
    %1162 = vmatprep.subr.mxu0 0.0
    %1163 = vmatpush1.msra.mxu0 0.0
    %1164 = vmatprep.mubr.f32.mxu0 0.0
    %1165 = vmatmul.mubr.f32.gmra.mrb[0].mxu0 %v1098
    %v1166 = vpop.f32.mrb[0].mxu0
    %v1167 = vadd.f32 %v244, %v1166
    %v1168 = vpop.f32.mrb[0].mxu0
    %1169 = vdwg.mxu0
    %vm1170 = vcmask 74752
    %v1171 = vsel %vm1170, %v1167, -inf
    %1172 = vmax.xlane.f32.xlu0 %v1171
    %v1173 = vpop.xlane.xlu0 %1172
    %v1174 = vsub.f32 %v1167, %v1173
    %v1175 = vmul.f32 %v1174, 1.442695
    %v1176 = vpow.pop %v1175
    %v1177 = vsel %vm1170, %v1176, 0.0
    %1178 = vadd.xlane.f32.xlu0 %v1177
    %v1179 = vpop.xlane.xlu0 %1178
    %v1180 = vrcp.pop %v1179
    %v1181 = vmul.f32 %v1176, %v1180
    %1182 = vst.msk [vmem:[#allocation8] sm:$0x3] %vm1170, %v1181
    // Predicated region
    $region46: #{tpu_custom_call.1} parent=1 // pred_check
      _
    $region47: #{tpu_custom_call.1} parent=1 // pred_check_branch
      %1184 = sbr.rel (0) target = $region49
    $region48: #{tpu_custom_call.1} parent=1 // pred_region
      %s1186 = ssub.s32 32, 32
      %1187 = vsyncadd [#allocation4], %s1186
      %s1189 = sshll.u32 [#allocation8], 4
      %s1190 = int_to_ptr.vmem [resolvable:$true] %s1189
      %1192 = dma.vmem_to_hbm [thread:$0]  %s1190, 32, %s8, [#allocation4]
    $region49: #{tpu_custom_call.1} parent=1 // pred_fallthru
      _
    // Predicated region
    $region50: #{tpu_custom_call.1} parent=1 // pred_check
      _
    $region51: #{tpu_custom_call.1} parent=1 // pred_check_branch
      %1194 = sbr.rel (0) target = $region53
    $region52: #{tpu_custom_call.1} parent=1 // pred_region
      %1195 = dma.done [#allocation4], 32
    $region53: #{tpu_custom_call.1} parent=1 // pred_fallthru
      _
    %1196 = vsyncpa [#allocation3], 1
    %1197 = vsyncpa [#allocation6], 1
    %1198 = vsyncpa [#allocation4], 1

</llo_original>
